<compile_context>
chip_gen: v6e
topology: v6e:2x2x1
jax: 0.10.0
libtpu: 0.0.40
codegen_flags: <defaults>
</compile_context>

<pallas_src>
import jax
import jax.numpy as jnp
from jax.experimental import pallas as pl
from jax.experimental.pallas import tpu as pltpu

_LANE_W = 512      # lane-dense last dim (multiple of 128) -> fat, unmasked stores
_TILE_ROWS = 1024  # 1024 x 512 x 4B = 2 MiB per f32 buffer; 4 live (double-buffered
                   # in + out) = 8 MiB, within v5e's 16 MiB / v7x's 32 MiB scoped VMEM


def _add_add2_kernel(x_ref, o_ref):
    x = x_ref[...]
    o_ref[...] = x + x + jnp.asarray(2, dtype=x.dtype)


def simple_module_forward(x):
    """Pallas implementation of SimpleModule.forward: (x + x) + 2."""
    orig_shape = x.shape
    dtype = x.dtype

    total = 1
    for d in orig_shape:
        total *= d

    W = _LANE_W
    # Pad the flat length to a multiple of 8*W so rows is always a sublane
    # multiple and the layout stays lane-dense (no (1, total) fallback).
    chunk = 8 * W
    padded = ((total + chunk - 1) // chunk) * chunk
    flat = x.reshape(-1)
    if padded != total:
        flat = jnp.pad(flat, (0, padded - total))

    rows = padded // W
    x2d = flat.reshape(rows, W)

    # Small inputs: single block (avoid ~0.35 us/step grid overhead).
    # Large inputs: tile over rows -> software-pipelined, VMEM-bounded tiles.
    tile_rows = rows if rows <= _TILE_ROWS else _TILE_ROWS
    grid = (pl.cdiv(rows, tile_rows),)

    itemsize = jnp.dtype(dtype).itemsize
    cost = pl.CostEstimate(
        flops=2 * total,
        transcendentals=0,
        bytes_accessed=2 * total * itemsize,
    )

    out2d = pl.pallas_call(
        _add_add2_kernel,
        out_shape=jax.ShapeDtypeStruct((rows, W), dtype),
        grid=grid,
        in_specs=[pl.BlockSpec((tile_rows, W), lambda i: (i, 0))],
        out_specs=pl.BlockSpec((tile_rows, W), lambda i: (i, 0)),
        compiler_params=pltpu.CompilerParams(
            # Row-tile axis is independent -> shard across v7x's 2 TensorCores;
            # harmless no-op on v5e/v6e.
            dimension_semantics=("parallel",),
        ),
        cost_estimate=cost,
    )(x2d)

    out_flat = out2d.reshape(-1)
    if padded != total:
        out_flat = out_flat[:total]
    return out_flat.reshape(orig_shape)


if __name__ == "__main__":
    key = jax.random.PRNGKey(0)
    # Small shape consistent with a generic NCHW tensor input: [2, 4, 16, 16]
    x = jax.random.normal(key, (2, 4, 16, 16), dtype=jnp.float32)

    y = simple_module_forward(x)
    jax.block_until_ready(y)

    # Verify against pure-JAX reference.
    y_ref = x + x + 2.0
    assert y.shape == x.shape
    assert jnp.allclose(y, y_ref, atol=1e-6, rtol=1e-6)

    print("KERNEL_OK")
</pallas_src>

<mosaic_0001>
module attributes {stable_mosaic.version = 11 : i64} {
  func.func @_add_add2_kernel(%arg0: i32, %arg1: memref<8x512xf32, #tpu.memory_space<vmem>>, %arg2: memref<8x512xf32, #tpu.memory_space<vmem>>) attributes {dimension_semantics = [#tpu.dimension_semantics<parallel>], iteration_bounds = array<i64: 1>, scalar_prefetch = 0 : i64, scratch_operands = 0 : i64, tpu.core_type = #tpu.core_type<tc>, window_params = [{transform_indices = @transform_0, window_bounds = array<i64: 8, 512>}, {transform_indices = @transform_1, window_bounds = array<i64: 8, 512>}]} {
    %c0 = arith.constant 0 : index
    %c0_0 = arith.constant 0 : index
    %0 = vector.load %arg1[%c0, %c0_0] : memref<8x512xf32, #tpu.memory_space<vmem>>, vector<8x512xf32>
    %1 = arith.addf %0, %0 : vector<8x512xf32>
    %cst = arith.constant 2.000000e+00 : f32
    %2 = vector.broadcast %cst : f32 to vector<8x512xf32>
    %3 = arith.addf %1, %2 : vector<8x512xf32>
    %c0_1 = arith.constant 0 : index
    %c0_2 = arith.constant 0 : index
    %4 = vector.load %arg2[%c0_1, %c0_2] : memref<8x512xf32, #tpu.memory_space<vmem>>, vector<8x512xf32>
    tpu.vector_store %arg2[%c0_1, %c0_2], %3 {strides = array<i32>} : memref<8x512xf32, #tpu.memory_space<vmem>>, vector<8x512xf32>,
    return
  }
  func.func @transform_0(%arg0: i32) -> (i32, i32) {
    %c0_i32 = arith.constant 0 : i32
    %c0_i32_0 = arith.constant 0 : i32
    return %arg0, %c0_i32 : i32, i32
  }
  func.func @transform_1(%arg0: i32) -> (i32, i32) {
    %c0_i32 = arith.constant 0 : i32
    %c0_i32_0 = arith.constant 0 : i32
    return %arg0, %c0_i32 : i32, i32
  }
}

</mosaic_0001>

<llo_original>
// kernel: tpu_custom_call.1
$region0: #{tpu_custom_call.1}
  #allocation0 [shape = 'u32[]', space=smem, size = 0x4, offset = 0x4, fixed_abs, tag = 'smem constant byte address 0x4 - core index']
  #allocation1 [shape = 'u32[144,128]{1,0:T(1,128)}', space=vmem, size = 0x12000, scoped, tag = 'internal scratch']
  %s0 = inlined_call_operand.hbm [shape: f32[8,512], index: 0, kind: input, shape index: {}]
  %s1 = inlined_call_operand.hbm [shape: f32[8,512], index: 1, kind: output, shape index: {}]
  %s2 = sld [smem:[#allocation0]]
  $region18: #{tpu_custom_call.1} parent=0
    _
  %s4 = ssub.s32 1, %s2
  %s5 = scalar_select 0, %s4, %s2
  $region1: #{tpu_custom_call.1} parent=0
    #allocation2 [shape = 'u8[16384]{0}', space=vmem, size = 0x4000, scoped, tag = 'input window, operand 0, single buffered']
    #allocation3 [shape = 's32[1]{0}', space=sflag, size = 0x4, scoped, tag = 'scoped memory for tpu_custom_call.1']
    #allocation4 [shape = 's32[1]{0}', space=sflag, size = 0x4, scoped, tag = 'scoped memory for tpu_custom_call.1']
    #allocation5 [shape = 'u8[16384]{0}', space=vmem, size = 0x4000, scoped, tag = 'output window, operand 0, single buffered']
    %6 = vsyncpa [#allocation3], 0
    %7 = vsyncpa [#allocation4], 0
    // Predicated region
    $region2: #{tpu_custom_call.1} parent=1 // pred_check
      _
    $region3: #{tpu_custom_call.1} parent=1 // pred_check_branch
      %9 = sbr.rel (0) target = $region5
    $region4: #{tpu_custom_call.1} parent=1 // pred_region
      %s11 = ssub.s32 512, 512
      %12 = vsyncadd [#allocation3], %s11
      %s14 = sshll.u32 [#allocation2], 4
      %s15 = int_to_ptr.vmem [resolvable:$true] %s14
      %17 = dma.hbm_to_vmem [thread:$0]  %s0, 512, %s15, [#allocation3]
    $region5: #{tpu_custom_call.1} parent=1 // pred_fallthru
      _
    // Predicated region
    $region6: #{tpu_custom_call.1} parent=1 // pred_check
      _
    $region7: #{tpu_custom_call.1} parent=1 // pred_check_branch
      %19 = sbr.rel (0) target = $region9
    $region8: #{tpu_custom_call.1} parent=1 // pred_region
      %20 = dma.done [#allocation3], 512
    $region9: #{tpu_custom_call.1} parent=1 // pred_fallthru
      _
    %v21 = vld [vmem:[#allocation2] sm:$0xff]
    %v22 = vld [vmem:[#allocation2 + $0x8] sm:$0xff]
    %v23 = vld [vmem:[#allocation2 + $0x10] sm:$0xff]
    %v24 = vld [vmem:[#allocation2 + $0x18] sm:$0xff]
    %v25 = vadd.f32 %v21, %v21
    %v26 = vadd.f32 %v22, %v22
    %v27 = vadd.f32 %v23, %v23
    %v28 = vadd.f32 %v24, %v24
    %v29 = vadd.f32 %v25, 2.0
    %v30 = vadd.f32 %v26, 2.0
    %v31 = vadd.f32 %v27, 2.0
    %v32 = vadd.f32 %v28, 2.0
    %33 = vst [vmem:[#allocation5] sm:$0xff] %v29
    %34 = vst [vmem:[#allocation5 + $0x8] sm:$0xff] %v30
    %35 = vst [vmem:[#allocation5 + $0x10] sm:$0xff] %v31
    %36 = vst [vmem:[#allocation5 + $0x18] sm:$0xff] %v32
    // Predicated region
    $region10: #{tpu_custom_call.1} parent=1 // pred_check
      _
    $region11: #{tpu_custom_call.1} parent=1 // pred_check_branch
      %38 = sbr.rel (0) target = $region13
    $region12: #{tpu_custom_call.1} parent=1 // pred_region
      %s40 = ssub.s32 512, 512
      %41 = vsyncadd [#allocation4], %s40
      %s43 = sshll.u32 [#allocation5], 4
      %s44 = int_to_ptr.vmem [resolvable:$true] %s43
      %46 = dma.vmem_to_hbm [thread:$0]  %s44, 512, %s1, [#allocation4]
    $region13: #{tpu_custom_call.1} parent=1 // pred_fallthru
      _
    // Predicated region
    $region14: #{tpu_custom_call.1} parent=1 // pred_check
      _
    $region15: #{tpu_custom_call.1} parent=1 // pred_check_branch
      %48 = sbr.rel (0) target = $region17
    $region16: #{tpu_custom_call.1} parent=1 // pred_region
      %49 = dma.done [#allocation4], 512
    $region17: #{tpu_custom_call.1} parent=1 // pred_fallthru
      _
    %50 = vsyncpa [#allocation3], 1
    %51 = vsyncpa [#allocation4], 1

</llo_original>
